<compile_context>
chip_gen: v7x
topology: tpu7x:2x2x1
jax: 0.10.0
libtpu: 0.0.40
codegen_flags: <defaults>
</compile_context>

<pallas_src>
import jax
import jax.numpy as jnp
from jax.experimental import pallas as pl
from jax.experimental.pallas import tpu as pltpu


def _round_up(x: int, m: int) -> int:
    return (x + m - 1) // m * m


_SUB_ROWS = 256  # inner row sub-tile: bounds the live f32 `h` slab (sub x emb_pad)


def _fused_classifier_kernel(x_ref, w_enc_ref, b_enc_ref, w_cls_ref, b_cls_ref,
                             out_ref):
    # Resident (grid-invariant, single-buffered) operands.
    w_enc = w_enc_ref[...]      # bf16 [in_dim, emb_pad]
    b_enc = b_enc_ref[...]      # f32  [1, emb_pad]
    w_cls = w_cls_ref[...]      # bf16 [emb_pad, nc_pad]
    b_cls = b_cls_ref[...]      # f32  [1, nc_pad]

    tb = x_ref.shape[0]
    sub = min(_SUB_ROWS, tb)

    def compute_rows(r0):
        x = x_ref[pl.ds(r0, sub), :].astype(jnp.bfloat16)
        # encoder: Linear + ReLU ("sentence_embedding"); bf16 MXU, f32 accumulation.
        h = jnp.dot(x, w_enc, preferred_element_type=jnp.float32)
        h = jnp.maximum(h + b_enc, 0.0)
        # classifier: nn.Linear(embedding_dim, num_classes); bf16 MXU, f32 accumulation.
        logits = jnp.dot(h.astype(jnp.bfloat16), w_cls,
                         preferred_element_type=jnp.float32)
        out_ref[pl.ds(r0, sub), :] = (logits + b_cls).astype(out_ref.dtype)

    if tb == sub:
        compute_rows(0)
    else:
        # tb is always a multiple of _SUB_ROWS when tb > _SUB_ROWS (see _choose_tb).
        def loop_body(r, carry):
            compute_rows(pl.multiple_of(r * sub, sub))
            return carry
        jax.lax.fori_loop(0, tb // sub, loop_body, 0)


def init_params(key, in_dim, embedding_dim, num_classes):
    """Deterministic f32 parameter init (PyTorch nn.Linear-style uniform bounds)."""
    k1, k2, k3, k4 = jax.random.split(key, 4)
    bound_enc = 1.0 / jnp.sqrt(in_dim)
    bound_cls = 1.0 / jnp.sqrt(embedding_dim)
    return {
        "w_enc": jax.random.uniform(k1, (in_dim, embedding_dim), jnp.float32,
                                    -bound_enc, bound_enc),
        "b_enc": jax.random.uniform(k2, (1, embedding_dim), jnp.float32,
                                    -bound_enc, bound_enc),
        "w_cls": jax.random.uniform(k3, (embedding_dim, num_classes), jnp.float32,
                                    -bound_cls, bound_cls),
        "b_cls": jax.random.uniform(k4, (1, num_classes), jnp.float32,
                                    -bound_cls, bound_cls),
    }


def prepare_params(params):
    """One-time prep: zero-pad the embedding / class lane dims to multiples of 128 and
    cast the matmul operands to bf16 (biases stay f32 for the accumulator-side adds).
    The feature (in_dim) contraction dim is NOT padded: the x block carries the full
    last dim, and zero-padded weight columns keep the padded lanes at exactly 0."""
    in_dim, emb = params["w_enc"].shape
    _, num_classes = params["w_cls"].shape
    emb_pad = _round_up(emb, 128)
    nc_pad = _round_up(num_classes, 128)

    w_enc = jnp.pad(params["w_enc"], ((0, 0), (0, emb_pad - emb)))
    b_enc = jnp.pad(params["b_enc"], ((0, 0), (0, emb_pad - emb)))
    w_cls = jnp.pad(params["w_cls"], ((0, emb_pad - emb), (0, nc_pad - num_classes)))
    b_cls = jnp.pad(params["b_cls"], ((0, 0), (0, nc_pad - num_classes)))

    return {
        "w_enc": w_enc.astype(jnp.bfloat16),
        "b_enc": b_enc.astype(jnp.float32),
        "w_cls": w_cls.astype(jnp.bfloat16),
        "b_cls": b_cls.astype(jnp.float32),
        "in_dim": in_dim,
        "emb_pad": emb_pad,
        "num_classes": num_classes,
        "nc_pad": nc_pad,
    }


def _choose_tb(batch: int) -> int:
    """Batch tile: big enough to amortize per-step overhead / saturate HBM streaming,
    >= 2 grid steps for mid-size batches (v7x megacore), multiple of 8 sublanes."""
    if batch >= 2048:
        return 1024
    if batch >= 1024:
        return 512
    if batch >= 512:
        return 256
    if batch >= 256:
        return max(128, _round_up((batch + 1) // 2, 16))   # 2 grid steps
    return min(_round_up(batch, 8), 256)                   # single (possibly ragged) tile


def _vmem_limit_bytes(tb, in_dim, emb_pad, nc_pad):
    in_lanes = _round_up(in_dim, 128)
    weights = (in_dim * emb_pad + emb_pad * nc_pad) * 2 + (emb_pad + nc_pad) * 4
    x_io = 2 * tb * in_lanes * 4              # double-buffered f32 x tiles (lane-padded in VMEM)
    out_io = 2 * tb * nc_pad * 4              # double-buffered f32 output tiles
    h_live = min(tb, _SUB_ROWS) * emb_pad * 4  # live f32 intermediate slab
    est = weights + x_io + out_io + h_live
    return int(min(64 * 1024 * 1024, max(32 * 1024 * 1024, int(1.5 * est))))


def softmax_classifier_forward(features, prep):
    """JAX wrapper mirroring SoftmaxClassifierModel.forward.

    features: dict with key "input" -> [batch, in_dim] float32
    prep:     output of prepare_params (padded bf16 weights, f32 biases, dims)
    returns   logits [batch, num_classes] float32
    """
    x = features["input"].astype(jnp.float32)
    batch, in_dim = x.shape
    assert in_dim == prep["in_dim"]
    emb_pad, nc_pad = prep["emb_pad"], prep["nc_pad"]
    num_classes = prep["num_classes"]

    tb = _choose_tb(batch)
    grid = (pl.cdiv(batch, tb),)

    grid_spec = pltpu.PrefetchScalarGridSpec(
        num_scalar_prefetch=0,
        grid=grid,
        in_specs=[
            # x streams per batch tile (double-buffered by default), full feature dim.
            pl.BlockSpec((tb, in_dim), lambda i: (i, 0)),
            # Grid-invariant weights/biases: resident, single-buffered.
            pl.BlockSpec((in_dim, emb_pad), lambda i: (0, 0),
                         pipeline_mode=pl.Buffered(1)),
            pl.BlockSpec((1, emb_pad), lambda i: (0, 0),
                         pipeline_mode=pl.Buffered(1)),
            pl.BlockSpec((emb_pad, nc_pad), lambda i: (0, 0),
                         pipeline_mode=pl.Buffered(1)),
            pl.BlockSpec((1, nc_pad), lambda i: (0, 0),
                         pipeline_mode=pl.Buffered(1)),
        ],
        # Lane-dense output (nc_pad is a multiple of 128 -> unmasked stores).
        out_specs=pl.BlockSpec((tb, nc_pad), lambda i: (i, 0)),
    )

    flops = 2 * batch * (in_dim * emb_pad + emb_pad * nc_pad)
    bytes_accessed = (
        batch * in_dim * 4
        + in_dim * emb_pad * 2 + emb_pad * nc_pad * 2
        + (emb_pad + nc_pad) * 4
        + batch * nc_pad * 4
    )

    logits_pad = pl.pallas_call(
        _fused_classifier_kernel,
        out_shape=jax.ShapeDtypeStruct((batch, nc_pad), jnp.float32),
        grid_spec=grid_spec,
        compiler_params=pltpu.CompilerParams(
            dimension_semantics=("parallel",),      # shards batch tiles across TCs on v7x
            vmem_limit_bytes=_vmem_limit_bytes(tb, in_dim, emb_pad, nc_pad)),
        cost_estimate=pl.CostEstimate(
            flops=flops, transcendentals=0, bytes_accessed=bytes_accessed),
    )(x, prep["w_enc"], prep["b_enc"], prep["w_cls"], prep["b_cls"])

    # Drop the padded (exactly-zero) classifier columns; batch rows are already exact.
    if num_classes != nc_pad:
        return logits_pad[:, :num_classes]
    return logits_pad


if __name__ == "__main__":
    key = jax.random.PRNGKey(0)

    def reference_bf16(x, params):
        xb = x.astype(jnp.bfloat16)
        h = jnp.maximum(
            jnp.dot(xb, params["w_enc"].astype(jnp.bfloat16),
                    preferred_element_type=jnp.float32) + params["b_enc"], 0.0)
        return jnp.dot(h.astype(jnp.bfloat16), params["w_cls"].astype(jnp.bfloat16),
                       preferred_element_type=jnp.float32) + params["b_cls"]

    # --- small case (toy sizes implied by the module) ---
    k1, k2, key = jax.random.split(key, 3)
    batch, in_dim, embedding_dim, num_classes = 8, 32, 64, 16
    x = jax.random.normal(k1, (batch, in_dim), jnp.float32)
    params = init_params(k2, in_dim, embedding_dim, num_classes)
    prep = prepare_params(params)
    logits = jax.block_until_ready(softmax_classifier_forward({"input": x}, prep))
    assert logits.shape == (batch, num_classes)
    assert jnp.allclose(logits, reference_bf16(x, params), atol=1e-2, rtol=1e-2)
    h32 = jnp.maximum(x @ params["w_enc"] + params["b_enc"], 0.0)
    ref32 = h32 @ params["w_cls"] + params["b_cls"]
    assert jnp.allclose(logits, ref32, atol=5e-2, rtol=5e-2)

    # --- larger ragged case: exercises the multi-step batch grid, masked last block,
    #     emb/class lane padding, and the inner row-sub-tile loop ---
    k3, k4 = jax.random.split(key)
    batch, in_dim, embedding_dim, num_classes = 1100, 40, 200, 37
    x = jax.random.normal(k3, (batch, in_dim), jnp.float32)
    params = init_params(k4, in_dim, embedding_dim, num_classes)
    prep = prepare_params(params)
    logits = jax.block_until_ready(softmax_classifier_forward({"input": x}, prep))
    assert logits.shape == (batch, num_classes)
    assert jnp.allclose(logits, reference_bf16(x, params), atol=2e-2, rtol=2e-2)

    print("KERNEL_OK")
</pallas_src>

<mosaic_0001>
module attributes {stable_mosaic.version = 11 : i64} {
  func.func @_fused_classifier_kernel(%arg0: i32, %arg1: memref<8x32xf32, #tpu.memory_space<vmem>>, %arg2: memref<32x128xbf16, #tpu.memory_space<vmem>>, %arg3: memref<1x128xf32, #tpu.memory_space<vmem>>, %arg4: memref<128x128xbf16, #tpu.memory_space<vmem>>, %arg5: memref<1x128xf32, #tpu.memory_space<vmem>>, %arg6: memref<8x128xf32, #tpu.memory_space<vmem>>) attributes {dimension_semantics = [#tpu.dimension_semantics<parallel>], iteration_bounds = array<i64: 1>, scalar_prefetch = 0 : i64, scratch_operands = 0 : i64, tpu.core_type = #tpu.core_type<tc>, window_params = [{transform_indices = @transform_0, window_bounds = array<i64: 8, 32>}, {pipeline_mode = #tpu.pipeline_mode<synchronous>, transform_indices = @transform_1, window_bounds = array<i64: 32, 128>}, {pipeline_mode = #tpu.pipeline_mode<synchronous>, transform_indices = @transform_2, window_bounds = array<i64: 1, 128>}, {pipeline_mode = #tpu.pipeline_mode<synchronous>, transform_indices = @transform_3, window_bounds = array<i64: 128, 128>}, {pipeline_mode = #tpu.pipeline_mode<synchronous>, transform_indices = @transform_4, window_bounds = array<i64: 1, 128>}, {transform_indices = @transform_5, window_bounds = array<i64: 8, 128>}]} {
    %c0 = arith.constant 0 : index
    %c0_0 = arith.constant 0 : index
    %0 = vector.load %arg2[%c0, %c0_0] : memref<32x128xbf16, #tpu.memory_space<vmem>>, vector<32x128xbf16>
    %c0_1 = arith.constant 0 : index
    %c0_2 = arith.constant 0 : index
    %1 = vector.load %arg3[%c0_1, %c0_2] : memref<1x128xf32, #tpu.memory_space<vmem>>, vector<1x128xf32>
    %c0_3 = arith.constant 0 : index
    %c0_4 = arith.constant 0 : index
    %2 = vector.load %arg4[%c0_3, %c0_4] : memref<128x128xbf16, #tpu.memory_space<vmem>>, vector<128x128xbf16>
    %c0_5 = arith.constant 0 : index
    %c0_6 = arith.constant 0 : index
    %3 = vector.load %arg5[%c0_5, %c0_6] : memref<1x128xf32, #tpu.memory_space<vmem>>, vector<1x128xf32>
    %c0_7 = arith.constant 0 : index
    %c0_8 = arith.constant 0 : index
    %4 = vector.load %arg1[%c0_7, %c0_8] : memref<8x32xf32, #tpu.memory_space<vmem>>, vector<8x32xf32>
    %5 = arith.truncf %4 : vector<8x32xf32> to vector<8x32xbf16>
    %cst = arith.constant dense<0.000000e+00> : vector<8x128xf32>
    %6 = tpu.matmul %5, %0, %cst {dimension_numbers = #tpu.dot_dimension_numbers<[1], [0], [0], [1], [0, 0, 1, 1], [], []>} : vector<8x32xbf16>, vector<32x128xbf16>, vector<8x128xf32> -> vector<8x128xf32>
    %7 = vector.broadcast %1 : vector<1x128xf32> to vector<8x128xf32>
    %8 = arith.addf %6, %7 : vector<8x128xf32>
    %cst_9 = arith.constant 0.000000e+00 : f32
    %9 = vector.broadcast %cst_9 : f32 to vector<8x128xf32>
    %10 = arith.maximumf %8, %9 : vector<8x128xf32>
    %11 = arith.truncf %10 : vector<8x128xf32> to vector<8x128xbf16>
    %cst_10 = arith.constant dense<0.000000e+00> : vector<8x128xf32>
    %12 = tpu.matmul %11, %2, %cst_10 {dimension_numbers = #tpu.dot_dimension_numbers<[1], [0], [0], [1], [0, 0, 1, 1], [], []>} : vector<8x128xbf16>, vector<128x128xbf16>, vector<8x128xf32> -> vector<8x128xf32>
    %13 = vector.broadcast %3 : vector<1x128xf32> to vector<8x128xf32>
    %14 = arith.addf %12, %13 : vector<8x128xf32>
    %c0_11 = arith.constant 0 : index
    %c0_12 = arith.constant 0 : index
    %15 = vector.load %arg6[%c0_11, %c0_12] : memref<8x128xf32, #tpu.memory_space<vmem>>, vector<8x128xf32>
    tpu.vector_store %arg6[%c0_11, %c0_12], %14 {strides = array<i32>} : memref<8x128xf32, #tpu.memory_space<vmem>>, vector<8x128xf32>,
    return
  }
  func.func @transform_0(%arg0: i32) -> (i32, i32) {
    %c0_i32 = arith.constant 0 : i32
    %c0_i32_0 = arith.constant 0 : i32
    return %arg0, %c0_i32 : i32, i32
  }
  func.func @transform_1(%arg0: i32) -> (i32, i32) {
    %c0_i32 = arith.constant 0 : i32
    %c0_i32_0 = arith.constant 0 : i32
    %c0_i32_1 = arith.constant 0 : i32
    return %c0_i32, %c0_i32_0 : i32, i32
  }
  func.func @transform_2(%arg0: i32) -> (i32, i32) {
    %c0_i32 = arith.constant 0 : i32
    %c0_i32_0 = arith.constant 0 : i32
    %c0_i32_1 = arith.constant 0 : i32
    return %c0_i32, %c0_i32_0 : i32, i32
  }
  func.func @transform_3(%arg0: i32) -> (i32, i32) {
    %c0_i32 = arith.constant 0 : i32
    %c0_i32_0 = arith.constant 0 : i32
    %c0_i32_1 = arith.constant 0 : i32
    return %c0_i32, %c0_i32_0 : i32, i32
  }
  func.func @transform_4(%arg0: i32) -> (i32, i32) {
    %c0_i32 = arith.constant 0 : i32
    %c0_i32_0 = arith.constant 0 : i32
    %c0_i32_1 = arith.constant 0 : i32
    return %c0_i32, %c0_i32_0 : i32, i32
  }
  func.func @transform_5(%arg0: i32) -> (i32, i32) {
    %c0_i32 = arith.constant 0 : i32
    %c0_i32_0 = arith.constant 0 : i32
    return %arg0, %c0_i32 : i32, i32
  }
}

</mosaic_0001>

<llo_original>
// kernel: tpu_custom_call.1
$region0: #{tpu_custom_call.1}
  #allocation0 [shape = 'u32[]', space=smem, size = 0x4, offset = 0x4, fixed_abs, tag = 'smem constant byte address 0x4 - core index']
  #allocation1 [shape = 'u32[144,128]{1,0:T(1,128)}', space=vmem, size = 0x12000, scoped, tag = 'internal scratch']
  %s0 = inlined_call_operand.hbm [shape: f32[8,32], index: 0, kind: input, shape index: {}]
  %s1 = inlined_call_operand.hbm [shape: bf16[32,128], index: 1, kind: input, shape index: {}]
  %s2 = inlined_call_operand.vmem [shape: f32[1,128], index: 2, kind: input, shape index: {}]
  %s3 = inlined_call_operand.hbm [shape: bf16[128,128], index: 3, kind: input, shape index: {}]
  %s4 = inlined_call_operand.vmem [shape: f32[1,128], index: 4, kind: input, shape index: {}]
  %s5 = inlined_call_operand.hbm [shape: f32[8,128], index: 5, kind: output, shape index: {}]
  %s6 = sld [smem:[#allocation0]]
  $region42: #{tpu_custom_call.1} parent=0
    _
  %s8 = ssub.s32 1, %s6
  %s9 = scalar_select 0, %s8, %s6
  $region1: #{tpu_custom_call.1} parent=0
    #allocation2 [shape = 'u8[4096]{0}', space=vmem, size = 0x1000, scoped, tag = 'input window, operand 0, single buffered']
    #allocation3 [shape = 's32[1]{0}', space=sflag, size = 0x4, scoped, tag = 'scoped memory for tpu_custom_call.1']
    #allocation4 [shape = 's32[1]{0}', space=sflag, size = 0x4, scoped, tag = 'scoped memory for tpu_custom_call.1']
    #allocation5 [shape = 'u8[8192]{0}', space=vmem, size = 0x2000, scoped, tag = 'input window, operand 1, single buffered']
    #allocation6 [shape = 's32[1]{0}', space=sflag, size = 0x4, scoped, tag = 'scoped memory for tpu_custom_call.1']
    #allocation7 [shape = 'u8[32768]{0}', space=vmem, size = 0x8000, scoped, tag = 'input window, operand 3, single buffered']
    #allocation8 [shape = 'u8[4096]{0}', space=vmem, size = 0x1000, scoped, tag = 'output window, operand 0, single buffered']
    %10 = vsyncpa [#allocation3], 0
    %11 = vsyncpa [#allocation6], 0
    %12 = vsyncpa [#allocation4], 0
    // Predicated region
    $region2: #{tpu_custom_call.1} parent=1 // pred_check
      _
    $region3: #{tpu_custom_call.1} parent=1 // pred_check_branch
      %14 = sbr.rel (0) target = $region5
    $region4: #{tpu_custom_call.1} parent=1 // pred_region
      %s16 = ssub.s32 128, 128
      %17 = vsyncadd [#allocation3], %s16
      %s19 = sshll.u32 [#allocation2], 4
      %s20 = int_to_ptr.vmem [resolvable:$true] %s19
      %22 = dma.hbm_to_vmem [thread:$0]  %s0, 128, %s20, [#allocation3]
    $region5: #{tpu_custom_call.1} parent=1 // pred_fallthru
      _
    // Predicated region
    $region6: #{tpu_custom_call.1} parent=1 // pred_check
      _
    $region7: #{tpu_custom_call.1} parent=1 // pred_check_branch
      %24 = sbr.rel (0) target = $region9
    $region8: #{tpu_custom_call.1} parent=1 // pred_region
      %s26 = ssub.s32 256, 256
      %27 = vsyncadd [#allocation6], %s26
      %s28 = sshll.u32 [#allocation5], 4
      %s29 = int_to_ptr.vmem [resolvable:$true] %s28
      %34 = dma.hbm_to_vmem [thread:$0]  %s1, 256, %s29, [#allocation6], 64, 64, 4
    $region9: #{tpu_custom_call.1} parent=1 // pred_fallthru
      _
    // Predicated region
    $region10: #{tpu_custom_call.1} parent=1 // pred_check
      _
    $region11: #{tpu_custom_call.1} parent=1 // pred_check_branch
      %36 = sbr.rel (0) target = $region13
    $region12: #{tpu_custom_call.1} parent=1 // pred_region
      _
    $region13: #{tpu_custom_call.1} parent=1 // pred_fallthru
      _
    // Predicated region
    $region14: #{tpu_custom_call.1} parent=1 // pred_check
      _
    $region15: #{tpu_custom_call.1} parent=1 // pred_check_branch
      %38 = sbr.rel (0) target = $region17
    $region16: #{tpu_custom_call.1} parent=1 // pred_region
      %s40 = ssub.s32 1024, 1024
      %41 = vsyncadd [#allocation6], %s40
      %s42 = sshll.u32 [#allocation7], 4
      %s43 = int_to_ptr.vmem [resolvable:$true] %s42
      %48 = dma.hbm_to_vmem [thread:$0]  %s3, 1024, %s43, [#allocation6], 64, 64, 4
    $region17: #{tpu_custom_call.1} parent=1 // pred_fallthru
      _
    // Predicated region
    $region18: #{tpu_custom_call.1} parent=1 // pred_check
      _
    $region19: #{tpu_custom_call.1} parent=1 // pred_check_branch
      %50 = sbr.rel (0) target = $region21
    $region20: #{tpu_custom_call.1} parent=1 // pred_region
      _
    $region21: #{tpu_custom_call.1} parent=1 // pred_fallthru
      _
    // Predicated region
    $region22: #{tpu_custom_call.1} parent=1 // pred_check
      _
    $region23: #{tpu_custom_call.1} parent=1 // pred_check_branch
      %52 = sbr.rel (0) target = $region25
    $region24: #{tpu_custom_call.1} parent=1 // pred_region
      %53 = dma.done [#allocation3], 128
    $region25: #{tpu_custom_call.1} parent=1 // pred_fallthru
      _
    // Predicated region
    $region26: #{tpu_custom_call.1} parent=1 // pred_check
      _
    $region27: #{tpu_custom_call.1} parent=1 // pred_check_branch
      %55 = sbr.rel (0) target = $region29
    $region28: #{tpu_custom_call.1} parent=1 // pred_region
      %56 = dma.done [#allocation6], 256
    $region29: #{tpu_custom_call.1} parent=1 // pred_fallthru
      _
    // Predicated region
    $region30: #{tpu_custom_call.1} parent=1 // pred_check
      _
    $region31: #{tpu_custom_call.1} parent=1 // pred_check_branch
      %58 = sbr.rel (0) target = $region33
    $region32: #{tpu_custom_call.1} parent=1 // pred_region
      %59 = dma.done [#allocation6], 1024
    $region33: #{tpu_custom_call.1} parent=1 // pred_fallthru
      _
    %v61 = vld [vmem:[#allocation5] sm:$0xf]
    %v62 = vld [vmem:[#allocation5 + $0x4] sm:$0xf]
    %v63 = vld [vmem:[#allocation5 + $0x8] sm:$0xf]
    %v64 = vld [vmem:[#allocation5 + $0xc] sm:$0xf]
    %v65 = vld [vmem:[%s2] sm:$0x1]
    %v66 = vld [vmem:[#allocation7] sm:$0xf]
    %v67 = vld [vmem:[#allocation7 + $0x4] sm:$0xf]
    %v68 = vld [vmem:[#allocation7 + $0x8] sm:$0xf]
    %v69 = vld [vmem:[#allocation7 + $0xc] sm:$0xf]
    %v70 = vld [vmem:[#allocation7 + $0x10] sm:$0xf]
    %v71 = vld [vmem:[#allocation7 + $0x14] sm:$0xf]
    %v72 = vld [vmem:[#allocation7 + $0x18] sm:$0xf]
    %v73 = vld [vmem:[#allocation7 + $0x1c] sm:$0xf]
    %v74 = vld [vmem:[#allocation7 + $0x20] sm:$0xf]
    %v75 = vld [vmem:[#allocation7 + $0x24] sm:$0xf]
    %v76 = vld [vmem:[#allocation7 + $0x28] sm:$0xf]
    %v77 = vld [vmem:[#allocation7 + $0x2c] sm:$0xf]
    %v78 = vld [vmem:[#allocation7 + $0x30] sm:$0xf]
    %v79 = vld [vmem:[#allocation7 + $0x34] sm:$0xf]
    %v80 = vld [vmem:[#allocation7 + $0x38] sm:$0xf]
    %v81 = vld [vmem:[#allocation7 + $0x3c] sm:$0xf]
    %v82 = vld [vmem:[%s4] sm:$0x1]
    %v83 = vld [vmem:[#allocation2] sm:$0xff]
    %v84 = vpack.c.bf16 %v83, %v83
    %v86 = vlaneseq
    %v87 = vshrl.u32 %v86, 7
    %v88 = vsub.s32 0, %v87
    %v89 = vrot.slane %v65, %v88
    %v95 = vunpack.c.l.b16 %v61
    %v96 = vunpack.c.l.b16 %v62
    %v97 = vunpack.c.l.b16 %v63
    %v98 = vunpack.c.l.b16 %v64
    %v99 = vpack.c.b16 %v96, %v95
    %v100 = vpack.c.b16 %v98, %v97
    %vm103 = vcmask 261120
    %v105 = vsel %vm103, %v84, 0
    %107 = vmatprep.subr.bf16.mxu0 0
    %108 = vmatpush1.bf16.msra.mxu0 %v99
    %109 = vmatprep.subr.bf16.mxu0 0
    %110 = vmatpush1.bf16.msra.mxu0 %v100
    %111 = vmatprep.subr.bf16.mxu0 0
    %112 = vmatpush1.bf16.msra.mxu0 0
    %113 = vmatprep.subr.bf16.mxu0 0
    %114 = vmatpush1.bf16.msra.mxu0 0
    %115 = vmatprep.subr.bf16.mxu0 0
    %116 = vmatpush1.bf16.msra.mxu0 0
    %117 = vmatprep.subr.bf16.mxu0 0
    %118 = vmatpush1.bf16.msra.mxu0 0
    %119 = vmatprep.subr.bf16.mxu0 0
    %120 = vmatpush1.bf16.msra.mxu0 0
    %121 = vmatprep.subr.bf16.mxu0 0
    %122 = vmatpush1.bf16.msra.mxu0 0
    %123 = vmatprep.subr.bf16.mxu0 0
    %124 = vmatpush1.bf16.msra.mxu0 0
    %125 = vmatprep.subr.bf16.mxu0 0
    %126 = vmatpush1.bf16.msra.mxu0 0
    %127 = vmatprep.subr.bf16.mxu0 0
    %128 = vmatpush1.bf16.msra.mxu0 0
    %129 = vmatprep.subr.bf16.mxu0 0
    %130 = vmatpush1.bf16.msra.mxu0 0
    %131 = vmatprep.subr.bf16.mxu0 0
    %132 = vmatpush1.bf16.msra.mxu0 0
    %133 = vmatprep.subr.bf16.mxu0 0
    %134 = vmatpush1.bf16.msra.mxu0 0
    %135 = vmatprep.subr.bf16.mxu0 0
    %136 = vmatpush1.bf16.msra.mxu0 0
    %137 = vmatprep.subr.bf16.mxu0 0
    %138 = vmatpush1.bf16.msra.mxu0 0
    %139 = vmatprep.mubr.bf16.mxu0 0
    %140 = vmatmul.mubr.bf16.gmra.mrb[0].mxu0 %v105
    %v141 = vpop.f32.mrb[0].mxu0
    %v142 = vadd.f32 %v89, %v141
    %v143 = vpop.f32.mrb[0].mxu0
    %v144 = vpop.f32.mrb[0].mxu0
    %v145 = vpop.f32.mrb[0].mxu0
    %146 = vdwg.mxu0
    %v147 = vmax.f32 %v142, 0.0
    %v148 = vpack.c.bf16 %v147, %v147
    %v150 = vlaneseq
    %v151 = vshrl.u32 %v150, 7
    %v152 = vsub.s32 0, %v151
    %v153 = vrot.slane %v82, %v152
    %v171 = vunpack.c.l.b16 %v66
    %v172 = vunpack.c.l.b16 %v67
    %v173 = vunpack.c.l.b16 %v68
    %v174 = vunpack.c.l.b16 %v69
    %v175 = vunpack.c.l.b16 %v70
    %v176 = vunpack.c.l.b16 %v71
    %v177 = vunpack.c.l.b16 %v72
    %v178 = vunpack.c.l.b16 %v73
    %v179 = vunpack.c.l.b16 %v74
    %v180 = vunpack.c.l.b16 %v75
    %v181 = vunpack.c.l.b16 %v76
    %v182 = vunpack.c.l.b16 %v77
    %v183 = vunpack.c.l.b16 %v78
    %v184 = vunpack.c.l.b16 %v79
    %v185 = vunpack.c.l.b16 %v80
    %v186 = vunpack.c.l.b16 %v81
    %v187 = vpack.c.b16 %v172, %v171
    %v188 = vpack.c.b16 %v174, %v173
    %v189 = vpack.c.b16 %v176, %v175
    %v190 = vpack.c.b16 %v178, %v177
    %v191 = vpack.c.b16 %v180, %v179
    %v192 = vpack.c.b16 %v182, %v181
    %v193 = vpack.c.b16 %v184, %v183
    %v194 = vpack.c.b16 %v186, %v185
    %203 = vmatprep.subr.bf16.mxu0 0
    %204 = vmatpush1.bf16.msra.mxu0 %v187
    %205 = vmatprep.subr.bf16.mxu0 0
    %206 = vmatpush1.bf16.msra.mxu0 %v188
    %207 = vmatprep.subr.bf16.mxu0 0
    %208 = vmatpush1.bf16.msra.mxu0 %v189
    %209 = vmatprep.subr.bf16.mxu0 0
    %210 = vmatpush1.bf16.msra.mxu0 %v190
    %211 = vmatprep.subr.bf16.mxu0 0
    %212 = vmatpush1.bf16.msra.mxu0 %v191
    %213 = vmatprep.subr.bf16.mxu0 0
    %214 = vmatpush1.bf16.msra.mxu0 %v192
    %215 = vmatprep.subr.bf16.mxu0 0
    %216 = vmatpush1.bf16.msra.mxu0 %v193
    %217 = vmatprep.subr.bf16.mxu0 0
    %218 = vmatpush1.bf16.msra.mxu0 %v194
    %219 = vmatprep.subr.bf16.mxu0 0
    %220 = vmatpush1.bf16.msra.mxu0 0
    %221 = vmatprep.subr.bf16.mxu0 0
    %222 = vmatpush1.bf16.msra.mxu0 0
    %223 = vmatprep.subr.bf16.mxu0 0
    %224 = vmatpush1.bf16.msra.mxu0 0
    %225 = vmatprep.subr.bf16.mxu0 0
    %226 = vmatpush1.bf16.msra.mxu0 0
    %227 = vmatprep.subr.bf16.mxu0 0
    %228 = vmatpush1.bf16.msra.mxu0 0
    %229 = vmatprep.subr.bf16.mxu0 0
    %230 = vmatpush1.bf16.msra.mxu0 0
    %231 = vmatprep.subr.bf16.mxu0 0
    %232 = vmatpush1.bf16.msra.mxu0 0
    %233 = vmatprep.subr.bf16.mxu0 0
    %234 = vmatpush1.bf16.msra.mxu0 0
    %235 = vmatprep.mubr.bf16.mxu0 0
    %236 = vmatmul.mubr.bf16.gmra.mrb[0].mxu0 %v148
    %v237 = vpop.f32.mrb[0].mxu0
    %v238 = vadd.f32 %v153, %v237
    %v239 = vpop.f32.mrb[0].mxu0
    %v240 = vpop.f32.mrb[0].mxu0
    %v241 = vpop.f32.mrb[0].mxu0
    %242 = vdwg.mxu0
    %243 = vst [vmem:[#allocation8] sm:$0xff] %v238
    // Predicated region
    $region34: #{tpu_custom_call.1} parent=1 // pred_check
      _
    $region35: #{tpu_custom_call.1} parent=1 // pred_check_branch
      %245 = sbr.rel (0) target = $region37
    $region36: #{tpu_custom_call.1} parent=1 // pred_region
      %s247 = ssub.s32 128, 128
      %248 = vsyncadd [#allocation4], %s247
      %s250 = sshll.u32 [#allocation8], 4
      %s251 = int_to_ptr.vmem [resolvable:$true] %s250
      %253 = dma.vmem_to_hbm [thread:$0]  %s251, 128, %s5, [#allocation4]
    $region37: #{tpu_custom_call.1} parent=1 // pred_fallthru
      _
    // Predicated region
    $region38: #{tpu_custom_call.1} parent=1 // pred_check
      _
    $region39: #{tpu_custom_call.1} parent=1 // pred_check_branch
      %255 = sbr.rel (0) target = $region41
    $region40: #{tpu_custom_call.1} parent=1 // pred_region
      %256 = dma.done [#allocation4], 128
    $region41: #{tpu_custom_call.1} parent=1 // pred_fallthru
      _
    %257 = vsyncpa [#allocation3], 1
    %258 = vsyncpa [#allocation6], 1
    %259 = vsyncpa [#allocation4], 1

</llo_original>
